<compile_context>
chip_gen: v5e
topology: v5e:2x2
jax: 0.10.0
libtpu: 0.0.40
codegen_flags: <defaults>
</compile_context>

<pallas_src>
import jax
import jax.numpy as jnp
from jax.experimental import pallas as pl
from jax.experimental.pallas import tpu as pltpu


def _round_up(x, m):
    return ((x + m - 1) // m) * m


def _choose_token_block(T, max_tb=512):
    """Pick token block TT (multiple of 8) and padded seq length T_p (multiple of TT)."""
    max_tb = max(8, (max_tb // 8) * 8)
    T8 = _round_up(T, 8)
    if T8 <= max_tb:
        return T8, T8
    # Prefer a multiple-of-8 divisor of the 8-padded length (no padding waste).
    for cand in range(max_tb, max_tb // 2 - 1, -8):
        if T8 % cand == 0:
            return cand, T8
    # Otherwise pad T up to a multiple of max_tb (output is cropped afterwards).
    return max_tb, _round_up(T, max_tb)


def learned_positional_lookup_embed(ids, emb_w, pos_w, *, offset=0,
                                    token_block=512,
                                    onehot_vocab_threshold=2048,
                                    force_path=None):
    """ids: [B, T] int; emb_w: [vsz, dsz]; pos_w: [mxlen, dsz] -> [B, T, dsz].

    force_path: None (auto), "onehot", or "gather".
    """
    B, T = ids.shape
    vsz, dsz = emb_w.shape
    mxlen = pos_w.shape[0]
    out_dtype = emb_w.dtype
    if isinstance(offset, int):
        assert 0 <= offset and offset + T <= mxlen, "positional table overflow"

    # PyTorch would raise on out-of-range ids; here they are clamped (documented
    # deviation -- a guard against silent OOB gathers).
    ids = jnp.clip(ids.astype(jnp.int32), 0, vsz - 1)

    # Slice the positional table in the wrapper: keeps `offset` out of the kernel
    # (works with a traced offset, no per-offset recompiles of the pallas_call).
    pos_slice = jax.lax.dynamic_slice_in_dim(pos_w, offset, T, axis=0)  # [T, dsz]

    # Lane-dense stores are the biggest single lever: pad dsz to a multiple of 128.
    dsz_p = _round_up(dsz, 128)
    if dsz_p != dsz:
        emb_w = jnp.pad(emb_w, ((0, 0), (0, dsz_p - dsz)))
        pos_slice = jnp.pad(pos_slice, ((0, 0), (0, dsz_p - dsz)))

    # Large token blocks amortize the ~0.35us/step pipeline overhead; pad T so the
    # block divides evenly and crop the output afterwards.
    TT, T_p = _choose_token_block(T, token_block)
    if T_p != T:
        ids = jnp.pad(ids, ((0, 0), (0, T_p - T)))              # pad ids are 0 (valid row)
        pos_slice = jnp.pad(pos_slice, ((0, T_p - T), (0, 0)))
    num_t_blocks = T_p // TT

    itemsize = jnp.dtype(out_dtype).itemsize
    table_bytes = vsz * dsz_p * itemsize
    # Footprint: single-buffered resident table + double-buffered pos/out tiles + slack.
    # TODO(synk): above ~32 MiB of table, flip to the pl.ANY DMA-gather path (v7x).
    vmem_limit = int(min(max(table_bytes + 4 * TT * dsz_p * itemsize + (4 << 20),
                             32 << 20), 120 << 20))
    cparams = pltpu.CompilerParams(
        dimension_semantics=("parallel", "parallel"),
        vmem_limit_bytes=vmem_limit,
    )

    use_onehot = (force_path == "onehot" or
                  (force_path is None and vsz <= onehot_vocab_threshold))

    cost = pl.CostEstimate(
        flops=(2 * B * T_p * vsz * dsz_p) if use_onehot else (B * T_p * dsz_p),
        transcendentals=0,
        bytes_accessed=(2 * B * T_p * dsz_p * itemsize   # gathered rows + output
                        + T_p * dsz_p * itemsize          # positional slice
                        + table_bytes                     # table (fetched once)
                        + B * T_p * 4),                   # ids
    )

    def table_spec(index_map, single_buffer):
        # Constant index_map -> the table is DMA'd once; the second revolving buffer
        # is pure waste, so request single buffering (halves resident VMEM footprint).
        if single_buffer:
            return pl.BlockSpec((vsz, dsz_p), index_map, pipeline_mode=pl.Buffered(1))
        return pl.BlockSpec((vsz, dsz_p), index_map)

    # ---- path 1: small vocab -> one-hot MXU matmul (no scalar gather loop) -------
    def onehot_kernel(ids_ref, emb_ref, pos_ref, out_ref):
        # ids_ref: (TT, 1) int32; emb_ref: (vsz, dsz_p); pos/out: (TT, dsz_p)
        iota = jax.lax.broadcasted_iota(jnp.int32, (TT, vsz), 1)
        one_hot = (ids_ref[...] == iota).astype(emb_ref.dtype)        # (TT, vsz)
        gathered = jnp.dot(one_hot, emb_ref[...],
                           preferred_element_type=jnp.float32)        # (TT, dsz_p)
        out_ref[...] = (gathered + pos_ref[...].astype(jnp.float32)).astype(out_ref.dtype)

    def build_onehot(single_buffer_table):
        grid_spec = pltpu.PrefetchScalarGridSpec(
            num_scalar_prefetch=0,
            grid=(num_t_blocks, B),            # t outer, b inner: pos re-fetch elided
            in_specs=[
                pl.BlockSpec((None, TT, 1), lambda t, b: (b, t, 0)),
                table_spec(lambda t, b: (0, 0), single_buffer_table),
                pl.BlockSpec((TT, dsz_p), lambda t, b: (t, 0)),
            ],
            out_specs=pl.BlockSpec((None, TT, dsz_p), lambda t, b: (b, t, 0)),
        )
        return pl.pallas_call(
            onehot_kernel,
            out_shape=jax.ShapeDtypeStruct((B, T_p, dsz_p), out_dtype),
            grid_spec=grid_spec,
            compiler_params=cparams,
            cost_estimate=cost,
        )

    # ---- path 2: large vocab -> SMEM ids + unrolled row gather, fused pos add ----
    def gather_kernel(ids_smem, emb_ref, pos_ref, out_ref):
        # ids_smem: (B*T_p,) int32 in SMEM (1-D: avoids the 2-D SMEM padding blow-up)
        t = pl.program_id(0)
        b = pl.program_id(1)
        base = b * T_p + t * TT

        def row(j, carry):
            tok = ids_smem[base + j]
            # Fused gather + positional add + store: one pass over each row, no
            # redundant full-tile read-add-store afterwards.
            out_ref[pl.ds(j, 1), :] = (
                emb_ref[pl.ds(tok, 1), :].astype(jnp.float32)
                + pos_ref[pl.ds(j, 1), :].astype(jnp.float32)
            ).astype(out_ref.dtype)
            return carry

        # 8-wide unroll exposes independent sld -> vld -> vst chains to the scheduler
        # so the loop is store-slot bound instead of latency bound.
        jax.lax.fori_loop(0, TT, row, 0, unroll=8)

    def build_gather(single_buffer_table):
        grid_spec = pltpu.PrefetchScalarGridSpec(
            num_scalar_prefetch=1,             # flat ids -> SMEM
            grid=(num_t_blocks, B),
            in_specs=[
                table_spec(lambda t, b, ids_s: (0, 0), single_buffer_table),
                pl.BlockSpec((TT, dsz_p), lambda t, b, ids_s: (t, 0)),
            ],
            out_specs=pl.BlockSpec((None, TT, dsz_p), lambda t, b, ids_s: (b, t, 0)),
        )
        return pl.pallas_call(
            gather_kernel,
            out_shape=jax.ShapeDtypeStruct((B, T_p, dsz_p), out_dtype),
            grid_spec=grid_spec,
            compiler_params=cparams,
            cost_estimate=cost,
        )

    if use_onehot:
        args = (ids.reshape(B, T_p, 1), emb_w, pos_slice)
        build = build_onehot
    else:
        args = (ids.reshape(B * T_p), emb_w, pos_slice)
        build = build_gather

    try:
        out = jax.block_until_ready(build(True)(*args))
    except Exception:
        # Compatibility fallback: if this jax build rejects pipeline_mode=pl.Buffered(1)
        # on a pallas_call BlockSpec, use the default double-buffered resident table.
        out = jax.block_until_ready(build(False)(*args))

    if T_p != T or dsz_p != dsz:
        out = out[:, :T, :dsz]
    return out


if __name__ == "__main__":
    # Small shapes consistent with the module's forward.
    B, T = 2, 8
    vsz, dsz = 64, 128
    mxlen = 64
    offset = 0
    padding_idx = 0  # Offsets.PAD

    key = jax.random.PRNGKey(0)
    k_emb, k_pos, k_ids = jax.random.split(key, 3)

    # nn.Embedding-style init (N(0,1)); padding_idx row zeroed like PyTorch.
    emb_w = jax.random.normal(k_emb, (vsz, dsz), dtype=jnp.float32)
    emb_w = emb_w.at[padding_idx].set(0.0)
    pos_w = jax.random.normal(k_pos, (mxlen, dsz), dtype=jnp.float32)

    ids = jax.random.randint(k_ids, (B, T), 0, vsz, dtype=jnp.int32)

    # Pure-JAX reference of the PyTorch forward (dropout p=0 is identity).
    ref = emb_w[ids] + pos_w[offset:offset + T][None, :, :]

    # 1) Default path for this small vocab: one-hot MXU matmul gather.
    out = learned_positional_lookup_embed(ids, emb_w, pos_w, offset=offset)
    out = jax.block_until_ready(out)
    assert out.shape == (B, T, dsz)
    assert jnp.allclose(out, ref, atol=1e-5), "one-hot path mismatch vs reference"

    # 2) Large-vocab path (SMEM ids + unrolled row gather), forced for coverage.
    out_g = learned_positional_lookup_embed(ids, emb_w, pos_w, offset=offset,
                                            force_path="gather")
    out_g = jax.block_until_ready(out_g)
    assert jnp.allclose(out_g, ref, atol=1e-6), "gather path mismatch vs reference"

    # 3) bf16 tables (recommended on v6e/v7x to halve the resident footprint).
    emb_bf = emb_w.astype(jnp.bfloat16)
    pos_bf = pos_w.astype(jnp.bfloat16)
    out_bf = learned_positional_lookup_embed(ids, emb_bf, pos_bf, offset=offset,
                                             force_path="gather")
    out_bf = jax.block_until_ready(out_bf)
    ref_bf = (emb_bf[ids].astype(jnp.float32)
              + pos_bf[offset:offset + T][None].astype(jnp.float32)).astype(jnp.bfloat16)
    assert jnp.allclose(out_bf.astype(jnp.float32), ref_bf.astype(jnp.float32),
                        atol=1e-2), "bf16 gather path mismatch vs reference"

    print("KERNEL_OK")
</pallas_src>

<mosaic_0001>
module attributes {stable_mosaic.version = 11 : i64} {
  func.func @onehot_kernel(%arg0: i32, %arg1: i32, %arg2: memref<1x8x1xi32, #tpu.memory_space<vmem>>, %arg3: memref<64x128xf32, #tpu.memory_space<vmem>>, %arg4: memref<8x128xf32, #tpu.memory_space<vmem>>, %arg5: memref<1x8x128xf32, #tpu.memory_space<vmem>>) attributes {dimension_semantics = [#tpu.dimension_semantics<parallel>, #tpu.dimension_semantics<parallel>], iteration_bounds = array<i64: 1, 2>, scalar_prefetch = 0 : i64, scratch_operands = 0 : i64, tpu.core_type = #tpu.core_type<tc>, window_params = [{transform_indices = @transform_0, window_bounds = array<i64: 1, 8, 1>}, {pipeline_mode = #tpu.pipeline_mode<synchronous>, transform_indices = @transform_1, window_bounds = array<i64: 64, 128>}, {transform_indices = @transform_2, window_bounds = array<i64: 8, 128>}, {transform_indices = @transform_3, window_bounds = array<i64: 1, 8, 128>}]} {
    %0 = tpu.iota {dimensions = array<i32: 1>} : vector<8x64xi32>
    %c0 = arith.constant 0 : index
    %c0_0 = arith.constant 0 : index
    %c0_1 = arith.constant 0 : index
    %1 = vector.load %arg2[%c0, %c0_0, %c0_1] : memref<1x8x1xi32, #tpu.memory_space<vmem>>, vector<1x8x1xi32>
    %2 = vector.shape_cast %1 : vector<1x8x1xi32> to vector<8x1xi32>
    %3 = vector.broadcast %2 : vector<8x1xi32> to vector<8x64xi32>
    %4 = arith.cmpi eq, %3, %0 : vector<8x64xi32>
    %5 = arith.extui %4 : vector<8x64xi1> to vector<8x64xi32>
    %6 = arith.sitofp %5 : vector<8x64xi32> to vector<8x64xf32>
    %c0_2 = arith.constant 0 : index
    %c0_3 = arith.constant 0 : index
    %7 = vector.load %arg3[%c0_2, %c0_3] : memref<64x128xf32, #tpu.memory_space<vmem>>, vector<64x128xf32>
    %cst = arith.constant dense<0.000000e+00> : vector<8x128xf32>
    %8 = tpu.matmul %6, %7, %cst {dimension_numbers = #tpu.dot_dimension_numbers<[1], [0], [0], [1], [0, 0, 1, 1], [], []>} : vector<8x64xf32>, vector<64x128xf32>, vector<8x128xf32> -> vector<8x128xf32>
    %c0_4 = arith.constant 0 : index
    %c0_5 = arith.constant 0 : index
    %9 = vector.load %arg4[%c0_4, %c0_5] : memref<8x128xf32, #tpu.memory_space<vmem>>, vector<8x128xf32>
    %10 = arith.addf %8, %9 : vector<8x128xf32>
    %c0_6 = arith.constant 0 : index
    %c0_7 = arith.constant 0 : index
    %c0_8 = arith.constant 0 : index
    %11 = vector.load %arg5[%c0_6, %c0_7, %c0_8] : memref<1x8x128xf32, #tpu.memory_space<vmem>>, vector<1x8x128xf32>
    %12 = vector.shape_cast %11 : vector<1x8x128xf32> to vector<8x128xf32>
    %13 = vector.shape_cast %10 : vector<8x128xf32> to vector<1x8x128xf32>
    tpu.vector_store %arg5[%c0_6, %c0_7, %c0_8], %13 {strides = array<i32>} : memref<1x8x128xf32, #tpu.memory_space<vmem>>, vector<1x8x128xf32>,
    return
  }
  func.func @transform_0(%arg0: i32, %arg1: i32) -> (i32, i32, i32) {
    %c0_i32 = arith.constant 0 : i32
    %c0_i32_0 = arith.constant 0 : i32
    return %arg1, %arg0, %c0_i32 : i32, i32, i32
  }
  func.func @transform_1(%arg0: i32, %arg1: i32) -> (i32, i32) {
    %c0_i32 = arith.constant 0 : i32
    %c0_i32_0 = arith.constant 0 : i32
    %c0_i32_1 = arith.constant 0 : i32
    return %c0_i32, %c0_i32_0 : i32, i32
  }
  func.func @transform_2(%arg0: i32, %arg1: i32) -> (i32, i32) {
    %c0_i32 = arith.constant 0 : i32
    %c0_i32_0 = arith.constant 0 : i32
    return %arg0, %c0_i32 : i32, i32
  }
  func.func @transform_3(%arg0: i32, %arg1: i32) -> (i32, i32, i32) {
    %c0_i32 = arith.constant 0 : i32
    %c0_i32_0 = arith.constant 0 : i32
    return %arg1, %arg0, %c0_i32 : i32, i32, i32
  }
}

module attributes {stable_mosaic.version = 11 : i64} {
  func.func @onehot_kernel(%arg0: i32, %arg1: i32, %arg2: memref<1x8x1xi32, #tpu.memory_space<vmem>>, %arg3: memref<64x128xf32, #tpu.memory_space<vmem>>, %arg4: memref<8x128xf32, #tpu.memory_space<vmem>>, %arg5: memref<1x8x128xf32, #tpu.memory_space<vmem>>) attributes {dimension_semantics = [#tpu.dimension_semantics<parallel>, #tpu.dimension_semantics<parallel>], iteration_bounds = array<i64: 1, 2>, scalar_prefetch = 0 : i64, scratch_operands = 0 : i64, tpu.core_type = #tpu.core_type<tc>, window_params = [{transform_indices = @transform_0, window_bounds = array<i64: 1, 8, 1>}, {pipeline_mode = #tpu.pipeline_mode<synchronous>, transform_indices = @transform_1, window_bounds = array<i64: 64, 128>}, {transform_indices = @transform_2, window_bounds = array<i64: 8, 128>}, {transform_indices = @transform_3, window_bounds = array<i64: 1, 8, 128>}]} {
    %0 = tpu.iota {dimensions = array<i32: 1>} : vector<8x64xi32>
    %c0 = arith.constant 0 : index
    %c0_0 = arith.constant 0 : index
    %c0_1 = arith.constant 0 : index
    %1 = vector.load %arg2[%c0, %c0_0, %c0_1] : memref<1x8x1xi32, #tpu.memory_space<vmem>>, vector<1x8x1xi32>
    %2 = vector.shape_cast %1 : vector<1x8x1xi32> to vector<8x1xi32>
    %3 = vector.broadcast %2 : vector<8x1xi32> to vector<8x64xi32>
    %4 = arith.cmpi eq, %3, %0 : vector<8x64xi32>
    %5 = arith.extui %4 : vector<8x64xi1> to vector<8x64xi32>
    %6 = arith.sitofp %5 : vector<8x64xi32> to vector<8x64xf32>
    %c0_2 = arith.constant 0 : index
    %c0_3 = arith.constant 0 : index
    %7 = vector.load %arg3[%c0_2, %c0_3] : memref<64x128xf32, #tpu.memory_space<vmem>>, vector<64x128xf32>
    %cst = arith.constant dense<0.000000e+00> : vector<8x128xf32>
    %8 = tpu.matmul %6, %7, %cst {dimension_numbers = #tpu.dot_dimension_numbers<[1], [0], [0], [1], [0, 0, 1, 1], [], []>} : vector<8x64xf32>, vector<64x128xf32>, vector<8x128xf32> -> vector<8x128xf32>
    %c0_4 = arith.constant 0 : index
    %c0_5 = arith.constant 0 : index
    %9 = vector.load %arg4[%c0_4, %c0_5] : memref<8x128xf32, #tpu.memory_space<vmem>>, vector<8x128xf32>
    %10 = arith.addf %8, %9 : vector<8x128xf32>
    %c0_6 = arith.constant 0 : index
    %c0_7 = arith.constant 0 : index
    %c0_8 = arith.constant 0 : index
    %11 = vector.load %arg5[%c0_6, %c0_7, %c0_8] : memref<1x8x128xf32, #tpu.memory_space<vmem>>, vector<1x8x128xf32>
    %12 = vector.shape_cast %11 : vector<1x8x128xf32> to vector<8x128xf32>
    %13 = vector.shape_cast %10 : vector<8x128xf32> to vector<1x8x128xf32>
    tpu.vector_store %arg5[%c0_6, %c0_7, %c0_8], %13 {strides = array<i32>} : memref<1x8x128xf32, #tpu.memory_space<vmem>>, vector<1x8x128xf32>,
    return
  }
  func.func @transform_0(%arg0: i32, %arg1: i32) -> (i32, i32, i32) {
    %c0_i32 = arith.constant 0 : i32
    %c0_i32_0 = arith.constant 0 : i32
    return %arg1, %arg0, %c0_i32 : i32, i32, i32
  }
  func.func @transform_1(%arg0: i32, %arg1: i32) -> (i32, i32) {
    %c0_i32 = arith.constant 0 : i32
    %c0_i32_0 = arith.constant 0 : i32
    %c0_i32_1 = arith.constant 0 : i32
    return %c0_i32, %c0_i32_0 : i32, i32
  }
  func.func @transform_2(%arg0: i32, %arg1: i32) -> (i32, i32) {
    %c0_i32 = arith.constant 0 : i32
    %c0_i32_0 = arith.constant 0 : i32
    return %arg0, %c0_i32 : i32, i32
  }
  func.func @transform_3(%arg0: i32, %arg1: i32) -> (i32, i32, i32) {
    %c0_i32 = arith.constant 0 : i32
    %c0_i32_0 = arith.constant 0 : i32
    return %arg1, %arg0, %c0_i32 : i32, i32, i32
  }
}

</mosaic_0001>

<llo_original>
// kernel: tpu_custom_call.1
$region0: #{tpu_custom_call.1}
  #allocation0 [shape = 'u32[]', space=smem, size = 0x4, offset = 0x4, fixed_abs, tag = 'smem constant byte address 0x4 - core index']
  #allocation1 [shape = 'u32[72,128]{1,0:T(1,128)}', space=vmem, size = 0x9000, scoped, tag = 'internal scratch']
  %s0 = inlined_call_operand.vmem [shape: s32[2,8,1], index: 0, kind: input, shape index: {}]
  %s1 = inlined_call_operand.hbm [shape: f32[64,128], index: 1, kind: input, shape index: {}]
  %s2 = inlined_call_operand.vmem [shape: f32[8,128], index: 2, kind: input, shape index: {}]
  %s3 = inlined_call_operand.hbm [shape: f32[2,8,128], index: 3, kind: output, shape index: {}]
  %s4 = sld [smem:[#allocation0]]
  $region49: #{tpu_custom_call.1} parent=0
    _
  %s6 = ssub.s32 1, %s4
  %s7 = scalar_select 0, %s6, %s4
  $region1: #{tpu_custom_call.1} parent=0
    #allocation2 [shape = 'u8[32768]{0}', space=vmem, size = 0x8000, scoped, tag = 'input window, operand 1, single buffered']
    #allocation3 [shape = 's32[2]{0}', space=sflag, size = 0x8, scoped, tag = 'scoped memory for tpu_custom_call.1']
    #allocation4 [shape = 's32[2]{0}', space=sflag, size = 0x8, scoped, tag = 'scoped memory for tpu_custom_call.1']
    #allocation5 [shape = 'u8[8192]{0}', space=vmem, size = 0x2000, scoped, tag = 'output window, operand 0']
    %8 = vsyncpa [#allocation3], 0
    %9 = vsyncpa [#allocation4], 0
    %s10 = scalar_lea.sflag [#allocation4], 1
    %11 = vsyncpa %s10, 0
    loop: start=0, step=1, limit=4
    $region2: #{tpu_custom_call.1} parent=1 // loop_pre_header
      _
    $region3: #{tpu_custom_call.1} parent=1 // loop_header
      %s13 = sphi 0, %s17
      %p14 = scmp.ge.s32.totalorder %s13, 4
      %s20 = sphi 0, %s32
      %s21 = sphi 0, %s28
      %s22 = sphi 0, %s20
      %s23 = sphi 0, %s21
      %s24 = sphi 0, %s22
      %s25 = sphi 0, %s23
      %s37 = sphi 0, %s39
      %s40 = sphi 0, %s37
      %s41 = sphi 0, %s40
      %s57 = sphi 0, %s41
      %s61 = sphi 0, %s61
      %s63 = sphi 0, %s61
      %s64 = sphi 0, %s63
      %s78 = sphi 0, %s64
      %s84 = sphi 0, %s86
      %s87 = sphi 0, %s84
      %s88 = sphi 0, %s87
      %s104 = sphi 0, %s88
      %s112 = sphi 0, %s114
      %s115 = sphi 0, %s112
      %s116 = sphi 0, %s115
      %s132 = sphi 0, %s116
    $region4: #{tpu_custom_call.1} parent=1 // loop_header_branch
      %16 = sbr.rel (%p14) target = $region8
    $region5: #{tpu_custom_call.1} parent=1 // loop_body
      %s18 = ssub.s32 %s13, 1
      %s19 = ssub.s32 %s13, 2
      %s26 = sadd.s32 1, %s21
      %p27 = scmp.ge.s32.totalorder %s26, 2
      %s28 = scalar_select %p27, 0, %s26
      %s29 = sadd.s32 1, %s20
      %s30 = scalar_select %p27, %s29, %s20
      %p31 = scmp.ge.s32.totalorder %s30, 1
      %s32 = scalar_select %p31, 0, %s30
      %s33 = ssub.s32 %s21, %s28
      %s34 = ssub.s32 %s20, %s32
      %s35 = sor.u32 %s33, %s34
      %p36 = scmp.eq.s32.totalorder %s35, 0
      %s38 = sadd.s32 %s37, 1
      %s39 = scalar_select %p36, %s37, %s38
      %p42 = pneg %p36
      %p43 = scmp.eq.s32.totalorder %s13, 1
      %p44 = por %p42, %p43
      %p45 = scmp.ne.s32.totalorder %s37, %s40
      %p46 = scmp.eq.s32.totalorder %s13, 0
      %p47 = por %p45, %p46
      %p48 = scmp.ne.s32.totalorder %s37, %s40
      %p49 = scmp.eq.s32.totalorder %s18, 1
      %p50 = por %p48, %p49
      %p51 = scmp.ne.s32.totalorder %s40, %s41
      %p52 = scmp.eq.s32.totalorder %s18, 0
      %p53 = por %p51, %p52
      %p54 = scmp.ne.s32.totalorder %s40, %s41
      %p55 = scmp.eq.s32.totalorder %s19, 1
      %p56 = por %p54, %p55
      %p58 = scmp.ne.s32.totalorder %s41, %s57
      %p59 = scmp.eq.s32.totalorder %s19, 0
      %p60 = por %p58, %p59
      %s62 = sadd.s32 %s61, 1
      %p65 = scmp.eq.s32.totalorder %s13, 1
      %p66 = scmp.ne.s32.totalorder %s61, %s63
      %p67 = scmp.eq.s32.totalorder %s13, 0
      %p68 = por %p66, %p67
      %p69 = scmp.ne.s32.totalorder %s61, %s63
      %p70 = scmp.eq.s32.totalorder %s18, 1
      %p71 = por %p69, %p70
      %p72 = scmp.ne.s32.totalorder %s63, %s64
      %p73 = scmp.eq.s32.totalorder %s18, 0
      %p74 = por %p72, %p73
      %p75 = scmp.ne.s32.totalorder %s63, %s64
      %p76 = scmp.eq.s32.totalorder %s19, 1
      %p77 = por %p75, %p76
      %p79 = scmp.ne.s32.totalorder %s64, %s78
      %p80 = scmp.eq.s32.totalorder %s19, 0
      %p81 = por %p79, %p80
      %s82 = ssub.s32 %s20, %s32
      %p83 = scmp.eq.s32.totalorder %s82, 0
      %s85 = sadd.s32 %s84, 1
      %s86 = scalar_select %p83, %s84, %s85
      %p89 = pneg %p83
      %p90 = scmp.eq.s32.totalorder %s13, 1
      %p91 = por %p89, %p90
      %p92 = scmp.ne.s32.totalorder %s84, %s87
      %p93 = scmp.eq.s32.totalorder %s13, 0
      %p94 = por %p92, %p93
      %p95 = scmp.ne.s32.totalorder %s84, %s87
      %p96 = scmp.eq.s32.totalorder %s18, 1
      %p97 = por %p95, %p96
      %p98 = scmp.ne.s32.totalorder %s87, %s88
      %p99 = scmp.eq.s32.totalorder %s18, 0
      %p100 = por %p98, %p99
      %p101 = scmp.ne.s32.totalorder %s87, %s88
      %p102 = scmp.eq.s32.totalorder %s19, 1
      %p103 = por %p101, %p102
      %p105 = scmp.ne.s32.totalorder %s88, %s104
      %p106 = scmp.eq.s32.totalorder %s19, 0
      %p107 = por %p105, %p106
      %s108 = ssub.s32 %s21, %s28
      %s109 = ssub.s32 %s20, %s32
      %s110 = sor.u32 %s108, %s109
      %p111 = scmp.eq.s32.totalorder %s110, 0
      %s113 = sadd.s32 %s112, 1
      %s114 = scalar_select %p111, %s112, %s113
      %p117 = pneg %p111
      %p118 = scmp.eq.s32.totalorder %s13, 1
      %p119 = por %p117, %p118
      %p120 = scmp.ne.s32.totalorder %s112, %s115
      %p121 = scmp.eq.s32.totalorder %s13, 0
      %p122 = por %p120, %p121
      %p123 = scmp.ne.s32.totalorder %s112, %s115
      %p124 = scmp.eq.s32.totalorder %s18, 1
      %p125 = por %p123, %p124
      %p126 = scmp.ne.s32.totalorder %s115, %s116
      %p127 = scmp.eq.s32.totalorder %s18, 0
      %p128 = por %p126, %p127
      %p129 = scmp.ne.s32.totalorder %s115, %s116
      %p130 = scmp.eq.s32.totalorder %s19, 1
      %p131 = por %p129, %p130
      %p133 = scmp.ne.s32.totalorder %s116, %s132
      %p134 = scmp.eq.s32.totalorder %s19, 0
      %p135 = por %p133, %p134
      %p136 = scmp.le.s32.totalorder 1, %s13
      %p137 = scmp.lt.s32.totalorder %s13, 3
      %p138 = pnand %p136, %p137
      %p139 = pneg %p138
      // Predicated region
      $region9: #{tpu_custom_call.1} parent=5 // pred_check
        _
      $region10: #{tpu_custom_call.1} parent=5 // pred_check_branch
        %141 = sbr.rel (%p138) target = $region12
      $region11: #{tpu_custom_call.1} parent=5 // pred_region
        %s142 = ssub.s32 %s13, 1
        // Predicated region
        $region13: #{tpu_custom_call.1} parent=11 // pred_check
          %p143 = pneg %p74
        $region14: #{tpu_custom_call.1} parent=11 // pred_check_branch
          %145 = sbr.rel (%p143) target = $region16
        $region15: #{tpu_custom_call.1} parent=11 // pred_region
          %147 = vsyncadd [#allocation3], 0
          %s148 = sshll.u32 %s1, 4
          %s149 = int_to_ptr.hbm [resolvable:$true] %s148
          %s150 = sshll.u32 [#allocation2], 4
          %s151 = int_to_ptr.vmem [resolvable:$true] %s150
          %156 = dma.hbm_to_vmem [thread:$0]  %s149, 1024, %s151, [#allocation3], 128, 128, 8
        $region16: #{tpu_custom_call.1} parent=11 // pred_fallthru
          _
        // Predicated region
        $region17: #{tpu_custom_call.1} parent=11 // pred_check
          %p157 = pneg %p100
        $region18: #{tpu_custom_call.1} parent=11 // pred_check_branch
          %159 = sbr.rel (%p157) target = $region20
        $region19: #{tpu_custom_call.1} parent=11 // pred_region
          %p160 = scmp.lt.s32.totalorder %s22, 0
          %s161 = scalar_select %p160, %s22, 0
          %s162 = smul.addr %s161, 8
          %s163 = scalar_lea.vmem %s2, %s162
        $region20: #{tpu_custom_call.1} parent=11 // pred_fallthru
          _
      $region12: #{tpu_custom_call.1} parent=5 // pred_fallthru
        _
      %p164 = scmp.lt.s32.totalorder %s13, 2
      // Predicated region
      $region21: #{tpu_custom_call.1} parent=5 // pred_check
        %p165 = pneg %p164
      $region22: #{tpu_custom_call.1} parent=5 // pred_check_branch
        %167 = sbr.rel (%p165) target = $region24
      $region23: #{tpu_custom_call.1} parent=5 // pred_region
        // Predicated region
        $region25: #{tpu_custom_call.1} parent=23 // pred_check
          %p168 = pneg %p47
        $region26: #{tpu_custom_call.1} parent=23 // pred_check_branch
          %170 = sbr.rel (%p168) target = $region28
        $region27: #{tpu_custom_call.1} parent=23 // pred_region
          %p171 = scmp.lt.s32.totalorder %s21, 1
          %s172 = scalar_select %p171, %s21, 1
          %p173 = scmp.lt.s32.totalorder %s20, 0
          %s174 = scalar_select %p173, %s20, 0
          %s175 = sadd.s32 %s174, %s172
          %s176 = smul.addr %s175, 8
          %s177 = scalar_lea.vmem %s0, %s176
        $region28: #{tpu_custom_call.1} parent=23 // pred_fallthru
          _
      $region24: #{tpu_custom_call.1} parent=5 // pred_fallthru
        _
      %p178 = scmp.le.s32.totalorder 1, %s13
      %p179 = scmp.lt.s32.totalorder %s13, 3
      %p180 = pnand %p178, %p179
      %p181 = pneg %p180
      // Predicated region
      $region29: #{tpu_custom_call.1} parent=5 // pred_check
        _
      $region30: #{tpu_custom_call.1} parent=5 // pred_check_branch
        %183 = sbr.rel (%p180) target = $region32
      $region31: #{tpu_custom_call.1} parent=5 // pred_region
        %s184 = ssub.s32 %s13, 1
        // Predicated region
        $region33: #{tpu_custom_call.1} parent=31 // pred_check
          %p185 = pneg %p74
        $region34: #{tpu_custom_call.1} parent=31 // pred_check_branch
          %187 = sbr.rel (%p185) target = $region36
        $region35: #{tpu_custom_call.1} parent=31 // pred_region
          %189 = dma.done [#allocation3], 1024
        $region36: #{tpu_custom_call.1} parent=31 // pred_fallthru
          _
        %p190 = scmp.lt.s32.totalorder %s23, 1
        %s191 = scalar_select %p190, %s23, 1
        %p192 = scmp.lt.s32.totalorder %s22, 0
        %s193 = scalar_select %p192, %s22, 0
        %s194 = sadd.s32 %s193, %s191
        %s195 = smul.addr %s194, 8
        %s196 = scalar_lea.vmem %s0, %s195
        %p197 = pneg %p53
        %p198 = pneg %p50
        %p199 = pneg %p74
        %p200 = pneg %p71
        %p201 = scmp.lt.s32.totalorder %s22, 0
        %s202 = scalar_select %p201, %s22, 0
        %s203 = smul.addr %s202, 8
        %s204 = scalar_lea.vmem %s2, %s203
        %p205 = pneg %p100
        %p206 = pneg %p97
        %p207 = pneg %p128
        %p208 = pneg %p125
        %s209 = sand.u32 %s115, 1
        %s210 = scalar_lea.sflag [#allocation4], %s209
        %s211 = sand.u32 %s115, 1
        %s212 = smul.addr %s211, 8
        %s213 = scalar_lea.vmem [#allocation5], %s212
        %p214 = scmp.lt.s32.totalorder %s23, 1
        %s215 = scalar_select %p214, %s23, 1
        %p216 = scmp.lt.s32.totalorder %s22, 0
        %s217 = scalar_select %p216, %s22, 0
        %s218 = sadd.s32 %s217, %s215
        %s219 = smul.addr %s218, 8
        %s220 = scalar_lea.vmem %s0, %s219
        %p221 = scmp.lt.s32.totalorder %s22, 0
        %s222 = scalar_select %p221, %s22, 0
        %s223 = smul.addr %s222, 8
        %s224 = scalar_lea.vmem %s2, %s223
        %v225 = vlaneseq
        %v226 = vand.u32 %v225, 127
        %v227 = vld [vmem:[%s220] sm:$0xff]
        %228 = vset.pattern.permute.xlu0 0
        %229 = vperm.xlu0 %228, %v227
        %v230 = vpop.permute.xlu0 %229
        %vm231 = vcmp.eq.s32.totalorder %v230, %v226
        %v232 = vsel %vm231, 1, 0
        %v233 = vcvt.s32.f32 %v232
        %v234 = vld [vmem:[#allocation2] sm:$0xff]
        %v235 = vld [vmem:[#allocation2 + $0x8] sm:$0xff]
        %v236 = vld [vmem:[#allocation2 + $0x10] sm:$0xff]
        %v237 = vld [vmem:[#allocation2 + $0x18] sm:$0xff]
        %v238 = vld [vmem:[#allocation2 + $0x20] sm:$0xff]
        %v239 = vld [vmem:[#allocation2 + $0x28] sm:$0xff]
        %v240 = vld [vmem:[#allocation2 + $0x30] sm:$0xff]
        %v241 = vld [vmem:[#allocation2 + $0x38] sm:$0xff]
        %v242 = vld [vmem:[%s224] sm:$0xff]
        %vm243 = vcmask 523264
        %v245 = vsel %vm243, %v233, 0
        %247 = vmatpush.msra.mxu0 0.0
        %248 = vmatpush.msra.mxu0 0.0
        %249 = vmatpush.msra.mxu0 0.0
        %250 = vmatpush.msra.mxu0 0.0
        %251 = vmatpush.msra.mxu0 0.0
        %252 = vmatpush.msra.mxu0 0.0
        %253 = vmatpush.msra.mxu0 0.0
        %254 = vmatpush.msra.mxu0 0.0
        %255 = vmatpush.msra.mxu0 %v241
        %256 = vmatpush.msra.mxu0 %v240
        %257 = vmatpush.msra.mxu0 %v239
        %258 = vmatpush.msra.mxu0 %v238
        %259 = vmatpush.msra.mxu0 %v237
        %260 = vmatpush.msra.mxu0 %v236
        %261 = vmatpush.msra.mxu0 %v235
        %262 = vmatpush.msra.mxu0 %v234
        %263 = vmatmul.f32.gmra.mxu0 %v245
        %v264 = vpop.f32.mrf.mxu0
        %v265 = vadd.f32 %v242, %v264
        %266 = vdwg.mxu0
        %267 = vst [vmem:[%s213] sm:$0xff] %v265
        %s268 = sand.u32 %s115, 1
        %s269 = scalar_lea.sflag [#allocation4], %s268
        %s270 = sand.u32 %s115, 1
        %s271 = smul.addr %s270, 8
        %s272 = scalar_lea.vmem [#allocation5], %s271
        // Predicated region
        $region37: #{tpu_custom_call.1} parent=31 // pred_check
          %p273 = pneg %p125
        $region38: #{tpu_custom_call.1} parent=31 // pred_check_branch
          %275 = sbr.rel (%p273) target = $region40
        $region39: #{tpu_custom_call.1} parent=31 // pred_region
          %277 = vsyncadd %s269, 0
          %s278 = sadd.s32 %s22, %s23
          %s279 = smul.addr %s278, 8
          %s280 = scalar_lea.hbm %s3, %s279
          %s282 = sshll.u32 %s272, 4
          %s283 = int_to_ptr.vmem [resolvable:$true] %s282
          %s284 = sshll.u32 %s280, 4
          %s285 = int_to_ptr.hbm [resolvable:$true] %s284
          %287 = dma.vmem_to_hbm [thread:$0]  %s283, 128, %s285, %s269
        $region40: #{tpu_custom_call.1} parent=31 // pred_fallthru
          _
      $region32: #{tpu_custom_call.1} parent=5 // pred_fallthru
        _
      %p288 = scmp.le.s32.totalorder 2, %s13
      // Predicated region
      $region41: #{tpu_custom_call.1} parent=5 // pred_check
        %p289 = pneg %p288
      $region42: #{tpu_custom_call.1} parent=5 // pred_check_branch
        %291 = sbr.rel (%p289) target = $region44
      $region43: #{tpu_custom_call.1} parent=5 // pred_region
        %s292 = ssub.s32 %s13, 2
        // Predicated region
        $region45: #{tpu_custom_call.1} parent=43 // pred_check
          %p293 = pneg %p131
        $region46: #{tpu_custom_call.1} parent=43 // pred_check_branch
          %295 = sbr.rel (%p293) target = $region48
        $region47: #{tpu_custom_call.1} parent=43 // pred_region
          %s296 = sand.u32 %s116, 1
          %s297 = scalar_lea.sflag [#allocation4], %s296
          %s298 = sand.u32 %s116, 1
          %s299 = smul.addr %s298, 8
          %s300 = scalar_lea.vmem [#allocation5], %s299
          %302 = dma.done %s297, 128
        $region48: #{tpu_custom_call.1} parent=43 // pred_fallthru
          _
      $region44: #{tpu_custom_call.1} parent=5 // pred_fallthru
        _
    $region6: #{tpu_custom_call.1} parent=1 // loop_footer
      %s17 = sadd.s32 1, %s13
    $region7: #{tpu_custom_call.1} parent=1 // loop_footer_branch
      %12 = sbr.rel target = $region3
    $region8: #{tpu_custom_call.1} parent=1 // loop_exit
      _
    %303 = vsyncpa [#allocation3], 1
    %s304 = scalar_lea.sflag [#allocation3], 1
    %305 = vsyncpa %s304, 1
    %306 = vsyncpa [#allocation4], 1
    %s307 = scalar_lea.sflag [#allocation4], 1
    %308 = vsyncpa %s307, 1

// kernel: tpu_custom_call.1
$region0: #{tpu_custom_call.1}
  #allocation0 [shape = 'u32[]', space=smem, size = 0x4, offset = 0x4, fixed_abs, tag = 'smem constant byte address 0x4 - core index']
  #allocation1 [shape = 'u32[72,128]{1,0:T(1,128)}', space=vmem, size = 0x9000, scoped, tag = 'internal scratch']
  %s0 = inlined_call_operand.vmem [shape: s32[2,8,1], index: 0, kind: input, shape index: {}]
  %s1 = inlined_call_operand.hbm [shape: f32[64,128], index: 1, kind: input, shape index: {}]
  %s2 = inlined_call_operand.vmem [shape: f32[8,128], index: 2, kind: input, shape index: {}]
  %s3 = inlined_call_operand.hbm [shape: f32[2,8,128], index: 3, kind: output, shape index: {}]
  %s4 = sld [smem:[#allocation0]]
  $region49: #{tpu_custom_call.1} parent=0
    _
  %s6 = ssub.s32 1, %s4
  %s7 = scalar_select 0, %s6, %s4
  $region1: #{tpu_custom_call.1} parent=0
    #allocation2 [shape = 'u8[32768]{0}', space=vmem, size = 0x8000, scoped, tag = 'input window, operand 1, single buffered']
    #allocation3 [shape = 's32[2]{0}', space=sflag, size = 0x8, scoped, tag = 'scoped memory for tpu_custom_call.1']
    #allocation4 [shape = 's32[2]{0}', space=sflag, size = 0x8, scoped, tag = 'scoped memory for tpu_custom_call.1']
    #allocation5 [shape = 'u8[8192]{0}', space=vmem, size = 0x2000, scoped, tag = 'output window, operand 0']
    %8 = vsyncpa [#allocation3], 0
    %9 = vsyncpa [#allocation4], 0
    %s10 = scalar_lea.sflag [#allocation4], 1
    %11 = vsyncpa %s10, 0
    loop: start=0, step=1, limit=4
    $region2: #{tpu_custom_call.1} parent=1 // loop_pre_header
      _
    $region3: #{tpu_custom_call.1} parent=1 // loop_header
      %s13 = sphi 0, %s17
      %p14 = scmp.ge.s32.totalorder %s13, 4
      %s20 = sphi 0, %s32
      %s21 = sphi 0, %s28
      %s22 = sphi 0, %s20
      %s23 = sphi 0, %s21
      %s24 = sphi 0, %s22
      %s25 = sphi 0, %s23
      %s37 = sphi 0, %s39
      %s40 = sphi 0, %s37
      %s41 = sphi 0, %s40
      %s57 = sphi 0, %s41
      %s61 = sphi 0, %s61
      %s63 = sphi 0, %s61
      %s64 = sphi 0, %s63
      %s78 = sphi 0, %s64
      %s84 = sphi 0, %s86
      %s87 = sphi 0, %s84
      %s88 = sphi 0, %s87
      %s104 = sphi 0, %s88
      %s112 = sphi 0, %s114
      %s115 = sphi 0, %s112
      %s116 = sphi 0, %s115
      %s132 = sphi 0, %s116
    $region4: #{tpu_custom_call.1} parent=1 // loop_header_branch
      %16 = sbr.rel (%p14) target = $region8
    $region5: #{tpu_custom_call.1} parent=1 // loop_body
      %s18 = ssub.s32 %s13, 1
      %s19 = ssub.s32 %s13, 2
      %s26 = sadd.s32 1, %s21
      %p27 = scmp.ge.s32.totalorder %s26, 2
      %s28 = scalar_select %p27, 0, %s26
      %s29 = sadd.s32 1, %s20
      %s30 = scalar_select %p27, %s29, %s20
      %p31 = scmp.ge.s32.totalorder %s30, 1
      %s32 = scalar_select %p31, 0, %s30
      %s33 = ssub.s32 %s21, %s28
      %s34 = ssub.s32 %s20, %s32
      %s35 = sor.u32 %s33, %s34
      %p36 = scmp.eq.s32.totalorder %s35, 0
      %s38 = sadd.s32 %s37, 1
      %s39 = scalar_select %p36, %s37, %s38
      %p42 = pneg %p36
      %p43 = scmp.eq.s32.totalorder %s13, 1
      %p44 = por %p42, %p43
      %p45 = scmp.ne.s32.totalorder %s37, %s40
      %p46 = scmp.eq.s32.totalorder %s13, 0
      %p47 = por %p45, %p46
      %p48 = scmp.ne.s32.totalorder %s37, %s40
      %p49 = scmp.eq.s32.totalorder %s18, 1
      %p50 = por %p48, %p49
      %p51 = scmp.ne.s32.totalorder %s40, %s41
      %p52 = scmp.eq.s32.totalorder %s18, 0
      %p53 = por %p51, %p52
      %p54 = scmp.ne.s32.totalorder %s40, %s41
      %p55 = scmp.eq.s32.totalorder %s19, 1
      %p56 = por %p54, %p55
      %p58 = scmp.ne.s32.totalorder %s41, %s57
      %p59 = scmp.eq.s32.totalorder %s19, 0
      %p60 = por %p58, %p59
      %s62 = sadd.s32 %s61, 1
      %p65 = scmp.eq.s32.totalorder %s13, 1
      %p66 = scmp.ne.s32.totalorder %s61, %s63
      %p67 = scmp.eq.s32.totalorder %s13, 0
      %p68 = por %p66, %p67
      %p69 = scmp.ne.s32.totalorder %s61, %s63
      %p70 = scmp.eq.s32.totalorder %s18, 1
      %p71 = por %p69, %p70
      %p72 = scmp.ne.s32.totalorder %s63, %s64
      %p73 = scmp.eq.s32.totalorder %s18, 0
      %p74 = por %p72, %p73
      %p75 = scmp.ne.s32.totalorder %s63, %s64
      %p76 = scmp.eq.s32.totalorder %s19, 1
      %p77 = por %p75, %p76
      %p79 = scmp.ne.s32.totalorder %s64, %s78
      %p80 = scmp.eq.s32.totalorder %s19, 0
      %p81 = por %p79, %p80
      %s82 = ssub.s32 %s20, %s32
      %p83 = scmp.eq.s32.totalorder %s82, 0
      %s85 = sadd.s32 %s84, 1
      %s86 = scalar_select %p83, %s84, %s85
      %p89 = pneg %p83
      %p90 = scmp.eq.s32.totalorder %s13, 1
      %p91 = por %p89, %p90
      %p92 = scmp.ne.s32.totalorder %s84, %s87
      %p93 = scmp.eq.s32.totalorder %s13, 0
      %p94 = por %p92, %p93
      %p95 = scmp.ne.s32.totalorder %s84, %s87
      %p96 = scmp.eq.s32.totalorder %s18, 1
      %p97 = por %p95, %p96
      %p98 = scmp.ne.s32.totalorder %s87, %s88
      %p99 = scmp.eq.s32.totalorder %s18, 0
      %p100 = por %p98, %p99
      %p101 = scmp.ne.s32.totalorder %s87, %s88
      %p102 = scmp.eq.s32.totalorder %s19, 1
      %p103 = por %p101, %p102
      %p105 = scmp.ne.s32.totalorder %s88, %s104
      %p106 = scmp.eq.s32.totalorder %s19, 0
      %p107 = por %p105, %p106
      %s108 = ssub.s32 %s21, %s28
      %s109 = ssub.s32 %s20, %s32
      %s110 = sor.u32 %s108, %s109
      %p111 = scmp.eq.s32.totalorder %s110, 0
      %s113 = sadd.s32 %s112, 1
      %s114 = scalar_select %p111, %s112, %s113
      %p117 = pneg %p111
      %p118 = scmp.eq.s32.totalorder %s13, 1
      %p119 = por %p117, %p118
      %p120 = scmp.ne.s32.totalorder %s112, %s115
      %p121 = scmp.eq.s32.totalorder %s13, 0
      %p122 = por %p120, %p121
      %p123 = scmp.ne.s32.totalorder %s112, %s115
      %p124 = scmp.eq.s32.totalorder %s18, 1
      %p125 = por %p123, %p124
      %p126 = scmp.ne.s32.totalorder %s115, %s116
      %p127 = scmp.eq.s32.totalorder %s18, 0
      %p128 = por %p126, %p127
      %p129 = scmp.ne.s32.totalorder %s115, %s116
      %p130 = scmp.eq.s32.totalorder %s19, 1
      %p131 = por %p129, %p130
      %p133 = scmp.ne.s32.totalorder %s116, %s132
      %p134 = scmp.eq.s32.totalorder %s19, 0
      %p135 = por %p133, %p134
      %p136 = scmp.le.s32.totalorder 1, %s13
      %p137 = scmp.lt.s32.totalorder %s13, 3
      %p138 = pnand %p136, %p137
      %p139 = pneg %p138
      // Predicated region
      $region9: #{tpu_custom_call.1} parent=5 // pred_check
        _
      $region10: #{tpu_custom_call.1} parent=5 // pred_check_branch
        %141 = sbr.rel (%p138) target = $region12
      $region11: #{tpu_custom_call.1} parent=5 // pred_region
        %s142 = ssub.s32 %s13, 1
        // Predicated region
        $region13: #{tpu_custom_call.1} parent=11 // pred_check
          %p143 = pneg %p74
        $region14: #{tpu_custom_call.1} parent=11 // pred_check_branch
          %145 = sbr.rel (%p143) target = $region16
        $region15: #{tpu_custom_call.1} parent=11 // pred_region
          %147 = vsyncadd [#allocation3], 0
          %s148 = sshll.u32 %s1, 4
          %s149 = int_to_ptr.hbm [resolvable:$true] %s148
          %s150 = sshll.u32 [#allocation2], 4
          %s151 = int_to_ptr.vmem [resolvable:$true] %s150
          %156 = dma.hbm_to_vmem [thread:$0]  %s149, 1024, %s151, [#allocation3], 128, 128, 8
        $region16: #{tpu_custom_call.1} parent=11 // pred_fallthru
          _
        // Predicated region
        $region17: #{tpu_custom_call.1} parent=11 // pred_check
          %p157 = pneg %p100
        $region18: #{tpu_custom_call.1} parent=11 // pred_check_branch
          %159 = sbr.rel (%p157) target = $region20
        $region19: #{tpu_custom_call.1} parent=11 // pred_region
          %p160 = scmp.lt.s32.totalorder %s22, 0
          %s161 = scalar_select %p160, %s22, 0
          %s162 = smul.addr %s161, 8
          %s163 = scalar_lea.vmem %s2, %s162
        $region20: #{tpu_custom_call.1} parent=11 // pred_fallthru
          _
      $region12: #{tpu_custom_call.1} parent=5 // pred_fallthru
        _
      %p164 = scmp.lt.s32.totalorder %s13, 2
      // Predicated region
      $region21: #{tpu_custom_call.1} parent=5 // pred_check
        %p165 = pneg %p164
      $region22: #{tpu_custom_call.1} parent=5 // pred_check_branch
        %167 = sbr.rel (%p165) target = $region24
      $region23: #{tpu_custom_call.1} parent=5 // pred_region
        // Predicated region
        $region25: #{tpu_custom_call.1} parent=23 // pred_check
          %p168 = pneg %p47
        $region26: #{tpu_custom_call.1} parent=23 // pred_check_branch
          %170 = sbr.rel (%p168) target = $region28
        $region27: #{tpu_custom_call.1} parent=23 // pred_region
          %p171 = scmp.lt.s32.totalorder %s21, 1
          %s172 = scalar_select %p171, %s21, 1
          %p173 = scmp.lt.s32.totalorder %s20, 0
          %s174 = scalar_select %p173, %s20, 0
          %s175 = sadd.s32 %s174, %s172
          %s176 = smul.addr %s175, 8
          %s177 = scalar_lea.vmem %s0, %s176
        $region28: #{tpu_custom_call.1} parent=23 // pred_fallthru
          _
      $region24: #{tpu_custom_call.1} parent=5 // pred_fallthru
        _
      %p178 = scmp.le.s32.totalorder 1, %s13
      %p179 = scmp.lt.s32.totalorder %s13, 3
      %p180 = pnand %p178, %p179
      %p181 = pneg %p180
      // Predicated region
      $region29: #{tpu_custom_call.1} parent=5 // pred_check
        _
      $region30: #{tpu_custom_call.1} parent=5 // pred_check_branch
        %183 = sbr.rel (%p180) target = $region32
      $region31: #{tpu_custom_call.1} parent=5 // pred_region
        %s184 = ssub.s32 %s13, 1
        // Predicated region
        $region33: #{tpu_custom_call.1} parent=31 // pred_check
          %p185 = pneg %p74
        $region34: #{tpu_custom_call.1} parent=31 // pred_check_branch
          %187 = sbr.rel (%p185) target = $region36
        $region35: #{tpu_custom_call.1} parent=31 // pred_region
          %189 = dma.done [#allocation3], 1024
        $region36: #{tpu_custom_call.1} parent=31 // pred_fallthru
          _
        %p190 = scmp.lt.s32.totalorder %s23, 1
        %s191 = scalar_select %p190, %s23, 1
        %p192 = scmp.lt.s32.totalorder %s22, 0
        %s193 = scalar_select %p192, %s22, 0
        %s194 = sadd.s32 %s193, %s191
        %s195 = smul.addr %s194, 8
        %s196 = scalar_lea.vmem %s0, %s195
        %p197 = pneg %p53
        %p198 = pneg %p50
        %p199 = pneg %p74
        %p200 = pneg %p71
        %p201 = scmp.lt.s32.totalorder %s22, 0
        %s202 = scalar_select %p201, %s22, 0
        %s203 = smul.addr %s202, 8
        %s204 = scalar_lea.vmem %s2, %s203
        %p205 = pneg %p100
        %p206 = pneg %p97
        %p207 = pneg %p128
        %p208 = pneg %p125
        %s209 = sand.u32 %s115, 1
        %s210 = scalar_lea.sflag [#allocation4], %s209
        %s211 = sand.u32 %s115, 1
        %s212 = smul.addr %s211, 8
        %s213 = scalar_lea.vmem [#allocation5], %s212
        %p214 = scmp.lt.s32.totalorder %s23, 1
        %s215 = scalar_select %p214, %s23, 1
        %p216 = scmp.lt.s32.totalorder %s22, 0
        %s217 = scalar_select %p216, %s22, 0
        %s218 = sadd.s32 %s217, %s215
        %s219 = smul.addr %s218, 8
        %s220 = scalar_lea.vmem %s0, %s219
        %p221 = scmp.lt.s32.totalorder %s22, 0
        %s222 = scalar_select %p221, %s22, 0
        %s223 = smul.addr %s222, 8
        %s224 = scalar_lea.vmem %s2, %s223
        %v225 = vlaneseq
        %v226 = vand.u32 %v225, 127
        %v227 = vld [vmem:[%s220] sm:$0xff]
        %228 = vset.pattern.permute.xlu0 0
        %229 = vperm.xlu0 %228, %v227
        %v230 = vpop.permute.xlu0 %229
        %vm231 = vcmp.eq.s32.totalorder %v230, %v226
        %v232 = vsel %vm231, 1, 0
        %v233 = vcvt.s32.f32 %v232
        %v234 = vld [vmem:[#allocation2] sm:$0xff]
        %v235 = vld [vmem:[#allocation2 + $0x8] sm:$0xff]
        %v236 = vld [vmem:[#allocation2 + $0x10] sm:$0xff]
        %v237 = vld [vmem:[#allocation2 + $0x18] sm:$0xff]
        %v238 = vld [vmem:[#allocation2 + $0x20] sm:$0xff]
        %v239 = vld [vmem:[#allocation2 + $0x28] sm:$0xff]
        %v240 = vld [vmem:[#allocation2 + $0x30] sm:$0xff]
        %v241 = vld [vmem:[#allocation2 + $0x38] sm:$0xff]
        %v242 = vld [vmem:[%s224] sm:$0xff]
        %vm243 = vcmask 523264
        %v245 = vsel %vm243, %v233, 0
        %247 = vmatpush.msra.mxu0 0.0
        %248 = vmatpush.msra.mxu0 0.0
        %249 = vmatpush.msra.mxu0 0.0
        %250 = vmatpush.msra.mxu0 0.0
        %251 = vmatpush.msra.mxu0 0.0
        %252 = vmatpush.msra.mxu0 0.0
        %253 = vmatpush.msra.mxu0 0.0
        %254 = vmatpush.msra.mxu0 0.0
        %255 = vmatpush.msra.mxu0 %v241
        %256 = vmatpush.msra.mxu0 %v240
        %257 = vmatpush.msra.mxu0 %v239
        %258 = vmatpush.msra.mxu0 %v238
        %259 = vmatpush.msra.mxu0 %v237
        %260 = vmatpush.msra.mxu0 %v236
        %261 = vmatpush.msra.mxu0 %v235
        %262 = vmatpush.msra.mxu0 %v234
        %263 = vmatmul.f32.gmra.mxu0 %v245
        %v264 = vpop.f32.mrf.mxu0
        %v265 = vadd.f32 %v242, %v264
        %266 = vdwg.mxu0
        %267 = vst [vmem:[%s213] sm:$0xff] %v265
        %s268 = sand.u32 %s115, 1
        %s269 = scalar_lea.sflag [#allocation4], %s268
        %s270 = sand.u32 %s115, 1
        %s271 = smul.addr %s270, 8
        %s272 = scalar_lea.vmem [#allocation5], %s271
        // Predicated region
        $region37: #{tpu_custom_call.1} parent=31 // pred_check
          %p273 = pneg %p125
        $region38: #{tpu_custom_call.1} parent=31 // pred_check_branch
          %275 = sbr.rel (%p273) target = $region40
        $region39: #{tpu_custom_call.1} parent=31 // pred_region
          %277 = vsyncadd %s269, 0
          %s278 = sadd.s32 %s22, %s23
          %s279 = smul.addr %s278, 8
          %s280 = scalar_lea.hbm %s3, %s279
          %s282 = sshll.u32 %s272, 4
          %s283 = int_to_ptr.vmem [resolvable:$true] %s282
          %s284 = sshll.u32 %s280, 4
          %s285 = int_to_ptr.hbm [resolvable:$true] %s284
          %287 = dma.vmem_to_hbm [thread:$0]  %s283, 128, %s285, %s269
        $region40: #{tpu_custom_call.1} parent=31 // pred_fallthru
          _
      $region32: #{tpu_custom_call.1} parent=5 // pred_fallthru
        _
      %p288 = scmp.le.s32.totalorder 2, %s13
      // Predicated region
      $region41: #{tpu_custom_call.1} parent=5 // pred_check
        %p289 = pneg %p288
      $region42: #{tpu_custom_call.1} parent=5 // pred_check_branch
        %291 = sbr.rel (%p289) target = $region44
      $region43: #{tpu_custom_call.1} parent=5 // pred_region
        %s292 = ssub.s32 %s13, 2
        // Predicated region
        $region45: #{tpu_custom_call.1} parent=43 // pred_check
          %p293 = pneg %p131
        $region46: #{tpu_custom_call.1} parent=43 // pred_check_branch
          %295 = sbr.rel (%p293) target = $region48
        $region47: #{tpu_custom_call.1} parent=43 // pred_region
          %s296 = sand.u32 %s116, 1
          %s297 = scalar_lea.sflag [#allocation4], %s296
          %s298 = sand.u32 %s116, 1
          %s299 = smul.addr %s298, 8
          %s300 = scalar_lea.vmem [#allocation5], %s299
          %302 = dma.done %s297, 128
        $region48: #{tpu_custom_call.1} parent=43 // pred_fallthru
          _
      $region44: #{tpu_custom_call.1} parent=5 // pred_fallthru
        _
    $region6: #{tpu_custom_call.1} parent=1 // loop_footer
      %s17 = sadd.s32 1, %s13
    $region7: #{tpu_custom_call.1} parent=1 // loop_footer_branch
      %12 = sbr.rel target = $region3
    $region8: #{tpu_custom_call.1} parent=1 // loop_exit
      _
    %303 = vsyncpa [#allocation3], 1
    %s304 = scalar_lea.sflag [#allocation3], 1
    %305 = vsyncpa %s304, 1
    %306 = vsyncpa [#allocation4], 1
    %s307 = scalar_lea.sflag [#allocation4], 1
    %308 = vsyncpa %s307, 1

</llo_original>
